<compile_context>
chip_gen: v6e
topology: v6e:2x2x1
jax: 0.10.0
libtpu: 0.0.40
codegen_flags: <defaults>
</compile_context>

<pallas_src>
import functools

import jax
import jax.numpy as jnp
from jax import lax
from jax.experimental import pallas as pl
from jax.experimental.pallas import tpu as pltpu

_VMEM_LIMIT = 64 * 1024 * 1024


# ---------------------------------------------------------------------------
# Projection kernels (tiled over rows, weights stay resident in VMEM)
# ---------------------------------------------------------------------------

def _linear_kernel(x_ref, w_ref, b_ref, o_ref):
    # x: (TM, D_in), w: (D_in, D_out), b: (1, D_out).  Operands stay in their
    # native dtype; the MXU accumulates in f32 via preferred_element_type.
    y = jnp.dot(x_ref[...], w_ref[...], preferred_element_type=jnp.float32)
    o_ref[...] = (y + b_ref[...].astype(jnp.float32)).astype(o_ref.dtype)


def pallas_linear(x, w, b, *, tile_rows=512):
    """y = x @ w + b.  x: (..., D_in), w: (D_in, D_out), b: (D_out,)."""
    d_in = x.shape[-1]
    d_out = w.shape[1]
    x2d = x.reshape(-1, d_in)
    m = x2d.shape[0]
    tm = m if m <= tile_rows else tile_rows          # tile_rows is a multiple of 8
    y2d = pl.pallas_call(
        _linear_kernel,
        out_shape=jax.ShapeDtypeStruct((m, d_out), x.dtype),
        grid=(pl.cdiv(m, tm),),
        in_specs=[
            pl.BlockSpec((tm, d_in), lambda i: (i, 0)),
            pl.BlockSpec((d_in, d_out), lambda i: (0, 0)),   # resident weight
            pl.BlockSpec((1, d_out), lambda i: (0, 0)),
        ],
        out_specs=pl.BlockSpec((tm, d_out), lambda i: (i, 0)),
        compiler_params=pltpu.CompilerParams(
            dimension_semantics=("parallel",),
            vmem_limit_bytes=_VMEM_LIMIT),
    )(x2d, w, b.reshape(1, d_out))
    return y2d.reshape(x.shape[:-1] + (d_out,))


def _kv_proj_kernel(xk_ref, xv_ref, wk_ref, wv_ref, bk_ref, bv_ref,
                    k_ref, v_ref):
    k = jnp.dot(xk_ref[...], wk_ref[...], preferred_element_type=jnp.float32)
    v = jnp.dot(xv_ref[...], wv_ref[...], preferred_element_type=jnp.float32)
    k_ref[...] = (k + bk_ref[...].astype(jnp.float32)).astype(k_ref.dtype)
    v_ref[...] = (v + bv_ref[...].astype(jnp.float32)).astype(v_ref.dtype)


def pallas_kv_proj(key, value, w_k, b_k, w_v, b_v, *, tile_rows=512):
    """Fused key/value projections (single pallas_call, shared row tiling)."""
    B, T, d_in = key.shape
    d_out = w_k.shape[1]
    xk = key.reshape(-1, d_in)
    xv = value.reshape(-1, d_in)
    m = xk.shape[0]
    tm = m if m <= tile_rows else tile_rows
    row_spec = pl.BlockSpec((tm, d_in), lambda i: (i, 0))
    w_spec = pl.BlockSpec((d_in, d_out), lambda i: (0, 0))
    b_spec = pl.BlockSpec((1, d_out), lambda i: (0, 0))
    out_spec = pl.BlockSpec((tm, d_out), lambda i: (i, 0))
    k2d, v2d = pl.pallas_call(
        _kv_proj_kernel,
        out_shape=(jax.ShapeDtypeStruct((m, d_out), key.dtype),
                   jax.ShapeDtypeStruct((m, d_out), value.dtype)),
        grid=(pl.cdiv(m, tm),),
        in_specs=[row_spec, row_spec, w_spec, w_spec, b_spec, b_spec],
        out_specs=(out_spec, out_spec),
        compiler_params=pltpu.CompilerParams(
            dimension_semantics=("parallel",),
            vmem_limit_bytes=_VMEM_LIMIT),
    )(xk, xv, w_k, w_v, b_k.reshape(1, d_out), b_v.reshape(1, d_out))
    return k2d.reshape(B, T, d_out), v2d.reshape(B, T, d_out)


# ---------------------------------------------------------------------------
# Attention kernel: lane-dense (T, D) tiles, head split done in VMEM
# ---------------------------------------------------------------------------

def _attend_block(q, k, v, num_heads):
    """q: (TQ, D), k/v: (TK, D).  Per-head attention; head split in VMEM."""
    _, d = q.shape
    dh = d // num_heads
    scale = jnp.asarray(1.0 / (dh ** 0.5), q.dtype)
    q = q * scale                              # scale Q (TQ*D elems) not scores (H*TQ*TK)
    outs = []
    atts = []
    for h in range(num_heads):                 # static unroll over heads
        lo = h * dh
        qh = q[:, lo:lo + dh]                  # (TQ, dh)
        kh = k[:, lo:lo + dh]                  # (TK, dh)
        vh = v[:, lo:lo + dh]                  # (TK, dh)
        s = lax.dot_general(qh, kh, (((1,), (1,)), ((), ())),
                            preferred_element_type=jnp.float32)   # (TQ, TK)
        s = s - jnp.max(s, axis=-1, keepdims=True)
        e = jnp.exp(s)
        inv = pl.reciprocal(jnp.sum(e, axis=-1, keepdims=True), approx=True)
        att = e * inv                          # (TQ, TK) f32, rows sum to ~1
        outs.append(jnp.dot(att.astype(v.dtype), vh,
                            preferred_element_type=jnp.float32))  # (TQ, dh)
        atts.append(att)
    out = jnp.concatenate(outs, axis=-1)       # (TQ, D): one lane-dense store
    return out, atts


def _mha_kernel(q_ref, k_ref, v_ref, o_ref, att_ref, *, num_heads):
    out, atts = _attend_block(q_ref[0], k_ref[0], v_ref[0], num_heads)
    o_ref[0] = out.astype(o_ref.dtype)
    for h in range(num_heads):
        att_ref[0, h] = atts[h].astype(att_ref.dtype)


def _mha_kernel_no_att(q_ref, k_ref, v_ref, o_ref, *, num_heads):
    out, _ = _attend_block(q_ref[0], k_ref[0], v_ref[0], num_heads)
    o_ref[0] = out.astype(o_ref.dtype)


def pallas_mha(q, k, v, *, num_heads, return_attention=True, q_tile=256):
    """Scaled dot-product MHA.

    q: (B, Tq, D), k/v: (B, Tk, D), all lane-dense in D.
    Returns (out (B, Tq, D), att (B, H, Tq, Tk) or None).
    """
    # TODO(synk): K/V are kept fully resident per batch element; very long Tk
    # would need a K-tiled online-softmax variant (not required to return the
    # full attention-weight tensor the module exposes).
    B, Tq, D = q.shape
    Tk = k.shape[1]
    tq = Tq if Tq <= q_tile else q_tile          # q_tile is a multiple of 8
    grid = (B, pl.cdiv(Tq, tq))
    q_spec = pl.BlockSpec((1, tq, D), lambda b, i: (b, i, 0))
    kv_spec = pl.BlockSpec((1, Tk, D), lambda b, i: (b, 0, 0))
    o_spec = pl.BlockSpec((1, tq, D), lambda b, i: (b, i, 0))
    cparams = pltpu.CompilerParams(
        dimension_semantics=("parallel", "parallel"),
        vmem_limit_bytes=_VMEM_LIMIT)
    if return_attention:
        out, att = pl.pallas_call(
            functools.partial(_mha_kernel, num_heads=num_heads),
            out_shape=(jax.ShapeDtypeStruct((B, Tq, D), q.dtype),
                       jax.ShapeDtypeStruct((B, num_heads, Tq, Tk), q.dtype)),
            grid=grid,
            in_specs=[q_spec, kv_spec, kv_spec],
            out_specs=(o_spec,
                       pl.BlockSpec((1, num_heads, tq, Tk),
                                    lambda b, i: (b, 0, i, 0))),
            compiler_params=cparams,
        )(q, k, v)
        return out, att
    out = pl.pallas_call(
        functools.partial(_mha_kernel_no_att, num_heads=num_heads),
        out_shape=jax.ShapeDtypeStruct((B, Tq, D), q.dtype),
        grid=grid,
        in_specs=[q_spec, kv_spec, kv_spec],
        out_specs=o_spec,
        compiler_params=cparams,
    )(q, k, v)
    return out, None


# ---------------------------------------------------------------------------
# Module forward (glue in plain JAX, hot path in Pallas)
# ---------------------------------------------------------------------------

def strided_mha_forward(params, query, key, value, mask=None, *,
                        num_heads, stride, return_attention=True):
    """StridedMultiHeadAttention.forward (mask=None path)."""
    if mask is not None:
        # TODO(synk): optional additive position mask (mask * -1e9) is not implemented.
        raise NotImplementedError("mask is not supported")

    q_in = query[:, ::stride]                                   # (B, Tq, D)
    q = pallas_linear(q_in, params['w_q'], params['b_q'])
    k, v = pallas_kv_proj(key, value,
                          params['w_k'], params['b_k'],
                          params['w_v'], params['b_v'])
    ctx, att_w = pallas_mha(q, k, v, num_heads=num_heads,
                            return_attention=return_attention)
    out = pallas_linear(ctx, params['w_o'], params['b_o'])
    return out, att_w


def init_params(rng, dim_model):
    keys = jax.random.split(rng, 8)

    def lin(kw, kb):
        w = jax.random.normal(kw, (dim_model, dim_model), jnp.float32) * 0.05
        b = jax.random.normal(kb, (dim_model,), jnp.float32) * 0.01
        return w, b

    w_q, b_q = lin(keys[0], keys[1])
    w_k, b_k = lin(keys[2], keys[3])
    w_v, b_v = lin(keys[4], keys[5])
    w_o, b_o = lin(keys[6], keys[7])
    return dict(w_q=w_q, b_q=b_q, w_k=w_k, b_k=b_k,
                w_v=w_v, b_v=b_v, w_o=w_o, b_o=b_o)


# ---------------------------------------------------------------------------
# Pure-JAX reference (mirrors the PyTorch module) and test
# ---------------------------------------------------------------------------

def reference_forward(params, query, key, value, *, num_heads, stride):
    q = query[:, ::stride]
    B, Tq, D = q.shape
    dh = D // num_heads

    def lin(x, w, b):
        return x @ w + b

    Q = lin(q, params['w_q'], params['b_q'])
    K = lin(key, params['w_k'], params['b_k'])
    V = lin(value, params['w_v'], params['b_v'])

    def split(x):
        return x.reshape(B, -1, num_heads, dh).transpose(0, 2, 1, 3)

    Qh, Kh, Vh = split(Q), split(K), split(V)
    scores = jnp.einsum('bhqd,bhkd->bhqk', Qh, Kh) / (dh ** 0.5)
    att = jax.nn.softmax(scores, axis=-1)
    ctx = jnp.einsum('bhqk,bhkd->bhqd', att, Vh)
    ctx = ctx.transpose(0, 2, 1, 3).reshape(B, Tq, D)
    out = lin(ctx, params['w_o'], params['b_o'])
    return out, att


if __name__ == "__main__":
    B, T, D, H = 2, 32, 32, 4
    stride = 2

    root = jax.random.PRNGKey(0)
    kq, kk, kv, kp = jax.random.split(root, 4)
    query = jax.random.normal(kq, (B, T, D), jnp.float32)
    key_in = jax.random.normal(kk, (B, T, D), jnp.float32)
    value = jax.random.normal(kv, (B, T, D), jnp.float32)
    params = init_params(kp, D)

    out, att_w = strided_mha_forward(
        params, query, key_in, value, num_heads=H, stride=stride)
    jax.block_until_ready((out, att_w))

    # shape checks mirroring the torch module's semantics
    Tq = -(-T // stride)                # length after query striding
    assert out.shape == (B, Tq, D), out.shape
    assert att_w.shape == (B, H, Tq, T), att_w.shape

    # numerical check against a pure-JAX reference of the module
    out_ref, att_ref = reference_forward(
        params, query, key_in, value, num_heads=H, stride=stride)
    assert float(jnp.max(jnp.abs(out - out_ref))) < 2e-2
    assert float(jnp.max(jnp.abs(att_w - att_ref))) < 2e-2

    print("KERNEL_OK")
</pallas_src>

<mosaic_0001>
module attributes {stable_mosaic.version = 11 : i64} {
  func.func @_linear_kernel(%arg0: i32, %arg1: memref<32x32xf32, #tpu.memory_space<vmem>>, %arg2: memref<32x32xf32, #tpu.memory_space<vmem>>, %arg3: memref<1x32xf32, #tpu.memory_space<vmem>>, %arg4: memref<32x32xf32, #tpu.memory_space<vmem>>) attributes {dimension_semantics = [#tpu.dimension_semantics<parallel>], iteration_bounds = array<i64: 1>, scalar_prefetch = 0 : i64, scratch_operands = 0 : i64, tpu.core_type = #tpu.core_type<tc>, window_params = [{transform_indices = @transform_0, window_bounds = array<i64: 32, 32>}, {pipeline_mode = #tpu.pipeline_mode<synchronous>, transform_indices = @transform_1, window_bounds = array<i64: 32, 32>}, {pipeline_mode = #tpu.pipeline_mode<synchronous>, transform_indices = @transform_2, window_bounds = array<i64: 1, 32>}, {transform_indices = @transform_3, window_bounds = array<i64: 32, 32>}]} {
    %c0 = arith.constant 0 : index
    %c0_0 = arith.constant 0 : index
    %0 = vector.load %arg1[%c0, %c0_0] : memref<32x32xf32, #tpu.memory_space<vmem>>, vector<32x32xf32>
    %c0_1 = arith.constant 0 : index
    %c0_2 = arith.constant 0 : index
    %1 = vector.load %arg2[%c0_1, %c0_2] : memref<32x32xf32, #tpu.memory_space<vmem>>, vector<32x32xf32>
    %cst = arith.constant dense<0.000000e+00> : vector<32x32xf32>
    %2 = tpu.matmul %0, %1, %cst {dimension_numbers = #tpu.dot_dimension_numbers<[1], [0], [0], [1], [0, 0, 1, 1], [], []>} : vector<32x32xf32>, vector<32x32xf32>, vector<32x32xf32> -> vector<32x32xf32>
    %c0_3 = arith.constant 0 : index
    %c0_4 = arith.constant 0 : index
    %3 = vector.load %arg3[%c0_3, %c0_4] : memref<1x32xf32, #tpu.memory_space<vmem>>, vector<1x32xf32>
    %4 = vector.broadcast %3 : vector<1x32xf32> to vector<32x32xf32>
    %5 = arith.addf %2, %4 : vector<32x32xf32>
    %c0_5 = arith.constant 0 : index
    %c0_6 = arith.constant 0 : index
    %6 = vector.load %arg4[%c0_5, %c0_6] : memref<32x32xf32, #tpu.memory_space<vmem>>, vector<32x32xf32>
    tpu.vector_store %arg4[%c0_5, %c0_6], %5 {strides = array<i32>} : memref<32x32xf32, #tpu.memory_space<vmem>>, vector<32x32xf32>,
    return
  }
  func.func @transform_0(%arg0: i32) -> (i32, i32) {
    %c0_i32 = arith.constant 0 : i32
    %c0_i32_0 = arith.constant 0 : i32
    return %arg0, %c0_i32 : i32, i32
  }
  func.func @transform_1(%arg0: i32) -> (i32, i32) {
    %c0_i32 = arith.constant 0 : i32
    %c0_i32_0 = arith.constant 0 : i32
    %c0_i32_1 = arith.constant 0 : i32
    return %c0_i32, %c0_i32_0 : i32, i32
  }
  func.func @transform_2(%arg0: i32) -> (i32, i32) {
    %c0_i32 = arith.constant 0 : i32
    %c0_i32_0 = arith.constant 0 : i32
    %c0_i32_1 = arith.constant 0 : i32
    return %c0_i32, %c0_i32_0 : i32, i32
  }
  func.func @transform_3(%arg0: i32) -> (i32, i32) {
    %c0_i32 = arith.constant 0 : i32
    %c0_i32_0 = arith.constant 0 : i32
    return %arg0, %c0_i32 : i32, i32
  }
}

</mosaic_0001>

<llo_original>
// kernel: tpu_custom_call.1
$region0: #{tpu_custom_call.1}
  #allocation0 [shape = 'u32[]', space=smem, size = 0x4, offset = 0x4, fixed_abs, tag = 'smem constant byte address 0x4 - core index']
  #allocation1 [shape = 'u32[144,128]{1,0:T(1,128)}', space=vmem, size = 0x12000, scoped, tag = 'internal scratch']
  %s0 = inlined_call_operand.hbm [shape: f32[32,32], index: 0, kind: input, shape index: {}]
  %s1 = inlined_call_operand.hbm [shape: f32[32,32], index: 1, kind: input, shape index: {}]
  %s2 = inlined_call_operand.vmem [shape: f32[1,32], index: 2, kind: input, shape index: {}]
  %s3 = inlined_call_operand.hbm [shape: f32[32,32], index: 3, kind: output, shape index: {}]
  %s4 = sld [smem:[#allocation0]]
  $region30: #{tpu_custom_call.1} parent=0
    _
  %s6 = ssub.s32 1, %s4
  %s7 = scalar_select 0, %s6, %s4
  $region1: #{tpu_custom_call.1} parent=0
    #allocation2 [shape = 'u8[16384]{0}', space=vmem, size = 0x4000, scoped, tag = 'input window, operand 0, single buffered']
    #allocation3 [shape = 's32[1]{0}', space=sflag, size = 0x4, scoped, tag = 'scoped memory for tpu_custom_call.1']
    #allocation4 [shape = 's32[1]{0}', space=sflag, size = 0x4, scoped, tag = 'scoped memory for tpu_custom_call.1']
    #allocation5 [shape = 'u8[16384]{0}', space=vmem, size = 0x4000, scoped, tag = 'input window, operand 1, single buffered']
    #allocation6 [shape = 's32[1]{0}', space=sflag, size = 0x4, scoped, tag = 'scoped memory for tpu_custom_call.1']
    #allocation7 [shape = 'u8[16384]{0}', space=vmem, size = 0x4000, scoped, tag = 'output window, operand 0, single buffered']
    %8 = vsyncpa [#allocation3], 0
    %9 = vsyncpa [#allocation6], 0
    %10 = vsyncpa [#allocation4], 0
    // Predicated region
    $region2: #{tpu_custom_call.1} parent=1 // pred_check
      _
    $region3: #{tpu_custom_call.1} parent=1 // pred_check_branch
      %12 = sbr.rel (0) target = $region5
    $region4: #{tpu_custom_call.1} parent=1 // pred_region
      %s14 = ssub.s32 512, 512
      %15 = vsyncadd [#allocation3], %s14
      %s16 = sshll.u32 [#allocation2], 4
      %s17 = int_to_ptr.vmem [resolvable:$true] %s16
      %22 = dma.hbm_to_vmem [thread:$0]  %s0, 512, %s17, [#allocation3], 128, 128, 8
    $region5: #{tpu_custom_call.1} parent=1 // pred_fallthru
      _
    // Predicated region
    $region6: #{tpu_custom_call.1} parent=1 // pred_check
      _
    $region7: #{tpu_custom_call.1} parent=1 // pred_check_branch
      %24 = sbr.rel (0) target = $region9
    $region8: #{tpu_custom_call.1} parent=1 // pred_region
      %s26 = ssub.s32 512, 512
      %27 = vsyncadd [#allocation6], %s26
      %s28 = sshll.u32 [#allocation5], 4
      %s29 = int_to_ptr.vmem [resolvable:$true] %s28
      %34 = dma.hbm_to_vmem [thread:$0]  %s1, 512, %s29, [#allocation6], 128, 128, 8
    $region9: #{tpu_custom_call.1} parent=1 // pred_fallthru
      _
    // Predicated region
    $region10: #{tpu_custom_call.1} parent=1 // pred_check
      _
    $region11: #{tpu_custom_call.1} parent=1 // pred_check_branch
      %36 = sbr.rel (0) target = $region13
    $region12: #{tpu_custom_call.1} parent=1 // pred_region
      _
    $region13: #{tpu_custom_call.1} parent=1 // pred_fallthru
      _
    // Predicated region
    $region14: #{tpu_custom_call.1} parent=1 // pred_check
      _
    $region15: #{tpu_custom_call.1} parent=1 // pred_check_branch
      %38 = sbr.rel (0) target = $region17
    $region16: #{tpu_custom_call.1} parent=1 // pred_region
      %39 = dma.done [#allocation3], 512
    $region17: #{tpu_custom_call.1} parent=1 // pred_fallthru
      _
    // Predicated region
    $region18: #{tpu_custom_call.1} parent=1 // pred_check
      _
    $region19: #{tpu_custom_call.1} parent=1 // pred_check_branch
      %41 = sbr.rel (0) target = $region21
    $region20: #{tpu_custom_call.1} parent=1 // pred_region
      %42 = dma.done [#allocation6], 512
    $region21: #{tpu_custom_call.1} parent=1 // pred_fallthru
      _
    %v43 = vld [vmem:[#allocation2] sm:$0xff]
    %v44 = vld [vmem:[#allocation2 + $0x8] sm:$0xff]
    %v45 = vld [vmem:[#allocation2 + $0x10] sm:$0xff]
    %v46 = vld [vmem:[#allocation2 + $0x18] sm:$0xff]
    %v47 = vld [vmem:[#allocation5] sm:$0xff]
    %v48 = vld [vmem:[#allocation5 + $0x8] sm:$0xff]
    %v49 = vld [vmem:[#allocation5 + $0x10] sm:$0xff]
    %v50 = vld [vmem:[#allocation5 + $0x18] sm:$0xff]
    %v51 = vld [vmem:[%s2] sm:$0x1]
    %v53 = vlaneseq
    %v54 = vshrl.u32 %v53, 7
    %v55 = vsub.s32 0, %v54
    %v56 = vrot.slane %v51, %v55
    %vm58 = vcmask 261120
    %v60 = vsel %vm58, %v43, 0
    %v63 = vsel %vm58, %v44, 0
    %v66 = vsel %vm58, %v45, 0
    %v69 = vsel %vm58, %v46, 0
    %71 = vmatprep.subr.mxu0 0.0
    %72 = vmatpush1.msra.mxu0 0.0
    %73 = vmatprep.subr.mxu0 0.0
    %74 = vmatpush1.msra.mxu0 0.0
    %75 = vmatprep.subr.mxu0 0.0
    %76 = vmatpush1.msra.mxu0 0.0
    %77 = vmatprep.subr.mxu0 0.0
    %78 = vmatpush1.msra.mxu0 0.0
    %79 = vmatprep.subr.mxu0 0.0
    %80 = vmatpush1.msra.mxu0 0.0
    %81 = vmatprep.subr.mxu0 0.0
    %82 = vmatpush1.msra.mxu0 0.0
    %83 = vmatprep.subr.mxu0 0.0
    %84 = vmatpush1.msra.mxu0 0.0
    %85 = vmatprep.subr.mxu0 0.0
    %86 = vmatpush1.msra.mxu0 0.0
    %87 = vmatprep.subr.mxu0 0.0
    %88 = vmatpush1.msra.mxu0 0.0
    %89 = vmatprep.subr.mxu0 0.0
    %90 = vmatpush1.msra.mxu0 0.0
    %91 = vmatprep.subr.mxu0 0.0
    %92 = vmatpush1.msra.mxu0 0.0
    %93 = vmatprep.subr.mxu0 0.0
    %94 = vmatpush1.msra.mxu0 0.0
    %95 = vmatprep.subr.mxu0 0.0
    %96 = vmatpush1.msra.mxu0 %v50
    %97 = vmatprep.subr.mxu0 0.0
    %98 = vmatpush1.msra.mxu0 %v49
    %99 = vmatprep.subr.mxu0 0.0
    %100 = vmatpush1.msra.mxu0 %v48
    %101 = vmatprep.subr.mxu0 0.0
    %102 = vmatpush1.msra.mxu0 %v47
    %103 = vmatprep.subr.mxu0 0.0
    %104 = vmatpush2.msra.mxu0 0.0
    %105 = vmatprep.subr.mxu0 0.0
    %106 = vmatpush2.msra.mxu0 0.0
    %107 = vmatprep.subr.mxu0 0.0
    %108 = vmatpush2.msra.mxu0 0.0
    %109 = vmatprep.subr.mxu0 0.0
    %110 = vmatpush2.msra.mxu0 0.0
    %111 = vmatprep.subr.mxu0 0.0
    %112 = vmatpush2.msra.mxu0 0.0
    %113 = vmatprep.subr.mxu0 0.0
    %114 = vmatpush2.msra.mxu0 0.0
    %115 = vmatprep.subr.mxu0 0.0
    %116 = vmatpush2.msra.mxu0 0.0
    %117 = vmatprep.subr.mxu0 0.0
    %118 = vmatpush2.msra.mxu0 0.0
    %119 = vmatprep.subr.mxu0 0.0
    %120 = vmatpush2.msra.mxu0 0.0
    %121 = vmatprep.subr.mxu0 0.0
    %122 = vmatpush2.msra.mxu0 0.0
    %123 = vmatprep.subr.mxu0 0.0
    %124 = vmatpush2.msra.mxu0 0.0
    %125 = vmatprep.subr.mxu0 0.0
    %126 = vmatpush2.msra.mxu0 0.0
    %127 = vmatprep.subr.mxu0 0.0
    %128 = vmatpush2.msra.mxu0 0.0
    %129 = vmatprep.subr.mxu0 0.0
    %130 = vmatpush2.msra.mxu0 0.0
    %131 = vmatprep.subr.mxu0 0.0
    %132 = vmatpush2.msra.mxu0 0.0
    %133 = vmatprep.subr.mxu0 0.0
    %134 = vmatpush2.msra.mxu0 0.0
    %135 = vmatprep.mubr.f32.mxu0 0.0
    %136 = vmatmul.mubr.f32.gmra.mxu0 %v60
    %v137 = vpop.f32.mrf.mxu0
    %v138 = vadd.f32 %v56, %v137
    %v139 = vpop.f32.mrf.mxu0
    %140 = vmatprep.mubr.f32.mxu0 0.0
    %141 = vmatmul.mubr.f32.gmra.mxu0 %v63
    %v142 = vpop.f32.mrf.mxu0
    %v143 = vadd.f32 %v56, %v142
    %v144 = vpop.f32.mrf.mxu0
    %145 = vmatprep.mubr.f32.mxu0 0.0
    %146 = vmatmul.mubr.f32.gmra.mxu0 %v66
    %v147 = vpop.f32.mrf.mxu0
    %v148 = vadd.f32 %v56, %v147
    %v149 = vpop.f32.mrf.mxu0
    %150 = vmatprep.mubr.f32.mxu0 0.0
    %151 = vmatmul.mubr.f32.gmra.mxu0 %v69
    %v152 = vpop.f32.mrf.mxu0
    %v153 = vadd.f32 %v56, %v152
    %v154 = vpop.f32.mrf.mxu0
    %155 = vdwg.mxu0
    %156 = vst.msk [vmem:[#allocation7] sm:$0xff] %vm58, %v138
    %157 = vst.msk [vmem:[#allocation7 + $0x8] sm:$0xff] %vm58, %v143
    %158 = vst.msk [vmem:[#allocation7 + $0x10] sm:$0xff] %vm58, %v148
    %159 = vst.msk [vmem:[#allocation7 + $0x18] sm:$0xff] %vm58, %v153
    // Predicated region
    $region22: #{tpu_custom_call.1} parent=1 // pred_check
      _
    $region23: #{tpu_custom_call.1} parent=1 // pred_check_branch
      %161 = sbr.rel (0) target = $region25
    $region24: #{tpu_custom_call.1} parent=1 // pred_region
      %s163 = ssub.s32 512, 512
      %164 = vsyncadd [#allocation4], %s163
      %s165 = sshll.u32 [#allocation7], 4
      %s166 = int_to_ptr.vmem [resolvable:$true] %s165
      %171 = dma.vmem_to_hbm [thread:$0]  %s166, 512, %s3, [#allocation4], 128, 128, 8
    $region25: #{tpu_custom_call.1} parent=1 // pred_fallthru
      _
    // Predicated region
    $region26: #{tpu_custom_call.1} parent=1 // pred_check
      _
    $region27: #{tpu_custom_call.1} parent=1 // pred_check_branch
      %173 = sbr.rel (0) target = $region29
    $region28: #{tpu_custom_call.1} parent=1 // pred_region
      %174 = dma.done [#allocation4], 512
    $region29: #{tpu_custom_call.1} parent=1 // pred_fallthru
      _
    %175 = vsyncpa [#allocation3], 1
    %176 = vsyncpa [#allocation6], 1
    %177 = vsyncpa [#allocation4], 1

</llo_original>
